<compile_context>
chip_gen: v5e
topology: v5e:2x2
jax: 0.10.0
libtpu: 0.0.40
codegen_flags: <defaults>
</compile_context>

<pallas_src>
import math

import jax
import jax.numpy as jnp
from jax.experimental import pallas as pl
from jax.experimental.pallas import tpu as pltpu

# ---- model hyper-parameters (small, consistent with the module) -------------
HIDDEN = 32          # config.hidden_size
NUM_HEADS = 4        # MultiHeadedAttention heads
HEAD_DIM = HIDDEN // NUM_HEADS
FF = 128             # linear1 out features
NUM_LABELS = 3       # num_labels
LABEL_SMOOTHING = 0.1

LANE = 128           # lane-dense padding for all column blocks
SUBLANE = 8          # sublane padding for the batch dim
NEG_INF = -1e30      # finite "minus infinity" (avoids 0 * inf = nan)


# -----------------------------------------------------------------------------
# Pallas kernel: aggregation attention + MLP head + cross-entropy loss
# -----------------------------------------------------------------------------
def _head_kernel(x_ref, wqkv_ref, wb_ref, bias_ref, labels_ref,
                 logits_ref, loss_ref):
    Bp = labels_ref.shape[0]
    S = x_ref.shape[0] // Bp - 1            # evidence slots

    # --- static, 128-lane-aligned slices of the merged parameter slabs -------
    hmask = wb_ref[:, 0:LANE]               # [128,128] bf16 block-diag head mask
    w_o1 = wb_ref[:, LANE:2 * LANE]         # [128,128] bf16 (wo @ w1, rows>=H zero)
    w2 = wb_ref[:, 2 * LANE:3 * LANE]       # [128,128] bf16 (cols>=NUM_LABELS zero)

    bqkv = bias_ref[:, 0:3 * LANE]          # [1,384] f32
    b_o1 = bias_ref[:, 3 * LANE:4 * LANE]   # [1,128] f32
    b2 = bias_ref[:, 4 * LANE:5 * LANE]     # [1,128] f32
    cw = bias_ref[:, 5 * LANE:6 * LANE]     # [1,128] f32 class weights (0 beyond labels)

    # --- fused Q/K/V projection over the pre-stacked [claim; evidence] slab --
    # (the 1/sqrt(head_dim) scale is pre-folded into the Q columns of wqkv/bqkv)
    qkv = jnp.dot(x_ref[...], wqkv_ref[...],
                  preferred_element_type=jnp.float32) + bqkv      # [(1+S)*Bp, 384]

    q = qkv[0:Bp, 0:LANE]                                         # [Bp,128] (claim queries)

    # --- multi-head attention, statically unrolled over the S evidence slots.
    # Per-head group-sum + group-broadcast is one bf16 hmask matmul per slot.
    # TODO(synk): no evidence key-padding mask / attn_bias_type biases modeled.
    scores, values = [], []
    for s in range(S):
        r0 = (1 + s) * Bp                                         # sublane-aligned
        k_s = qkv[r0:r0 + Bp, LANE:2 * LANE]                      # [Bp,128]
        v_s = qkv[r0:r0 + Bp, 2 * LANE:3 * LANE]                  # [Bp,128]
        sc = jnp.dot((q * k_s).astype(jnp.bfloat16), hmask,
                     preferred_element_type=jnp.float32)          # [Bp,128]
        scores.append(sc)
        values.append(v_s)

    m = scores[0]
    for s in range(1, S):
        m = jnp.maximum(m, scores[s])
    p = [jnp.exp(scores[s] - m) for s in range(S)]
    denom = p[0]
    ctx = p[0] * values[0]
    for s in range(1, S):
        denom = denom + p[s]
        ctx = ctx + p[s] * values[s]
    ctx = ctx * pl.reciprocal(denom, approx=True)                 # [Bp,128]

    # --- classifier: (output projection folded into linear1) -> relu -> linear2
    # TODO(synk): dropout treated as identity (eval mode only).
    h1 = jnp.maximum(
        jnp.dot(ctx.astype(jnp.bfloat16), w_o1,
                preferred_element_type=jnp.float32) + b_o1, 0.0)  # [Bp,128]
    logits = jnp.dot(h1.astype(jnp.bfloat16), w2,
                     preferred_element_type=jnp.float32) + b2     # [Bp,128]
    logits_ref[...] = logits                                      # lane-dense store

    # ---- CrossEntropyLoss(weight, label_smoothing), reduction='mean' --------
    col = jax.lax.broadcasted_iota(jnp.int32, (Bp, LANE), 1)
    logits_m = jnp.where(col < NUM_LABELS, logits, NEG_INF)
    lmax = jnp.max(logits_m, axis=-1, keepdims=True)
    lse = jnp.log(jnp.sum(jnp.exp(logits_m - lmax), axis=-1, keepdims=True)) + lmax
    logp = logits_m - lse                                         # log-softmax

    labels = labels_ref[...]                                      # [Bp,1]; -1 = pad row
    onehot = (col == labels).astype(jnp.float32)
    valid = (labels >= 0).astype(jnp.float32)

    w_y = jnp.sum(onehot * cw, axis=-1, keepdims=True)            # weight[y_i] (0 on pads)
    nll = -jnp.sum(onehot * logp, axis=-1, keepdims=True)
    smooth = -jnp.sum(logp * cw, axis=-1, keepdims=True) * valid

    den = jnp.sum(w_y)                       # matches torch (no denom==0 guard)
    eps = LABEL_SMOOTHING
    loss = ((1.0 - eps) * jnp.sum(w_y * nll)
            + (eps / NUM_LABELS) * jnp.sum(smooth)) / den
    loss_ref[0, 0] = loss                                         # scalar store to SMEM


# -----------------------------------------------------------------------------
# jit'd wrapper: padding / stacking / bias concat fuse with the pallas_call
# -----------------------------------------------------------------------------
@jax.jit
def verification_head(claim_cls, evidence, params, labels, class_weights):
    B, H = claim_cls.shape
    S = evidence.shape[1]
    Bp = ((B + SUBLANE - 1) // SUBLANE) * SUBLANE

    # claim rows first, then evidence stacked slot-major ((S, Bp, H) flattened)
    # so each slot is a sublane-aligned static row window inside the kernel.
    claim_p = jnp.zeros((Bp, H), jnp.bfloat16).at[:B].set(claim_cls.astype(jnp.bfloat16))
    ev_p = jnp.zeros((S, Bp, H), jnp.bfloat16).at[:, :B].set(
        jnp.swapaxes(evidence, 0, 1).astype(jnp.bfloat16))
    x_all = jnp.concatenate([claim_p, ev_p.reshape(S * Bp, H)], axis=0)

    labels_p = jnp.full((Bp, 1), -1, jnp.int32).at[:B, 0].set(labels.astype(jnp.int32))
    cw_p = jnp.zeros((1, LANE), jnp.float32).at[0, :NUM_LABELS].set(
        class_weights.astype(jnp.float32))
    bias_all = jnp.concatenate([params['bias'], cw_p], axis=1)    # [1, 6*128] f32

    inputs = (x_all, params['wqkv'], params['wbig'], bias_all, labels_p)

    nrows = (1 + S) * Bp
    flops = 2 * (nrows * H * 3 * LANE        # fused QKV projection
                 + S * Bp * LANE * LANE      # per-slot head-mask score matmuls
                 + Bp * LANE * LANE          # fused wo@w1
                 + Bp * LANE * LANE)         # linear2 (padded)
    bytes_accessed = (sum(int(x.size) * x.dtype.itemsize for x in inputs)
                      + Bp * LANE * 4 + 4)
    cost = pl.CostEstimate(flops=flops,
                           transcendentals=(S + 1) * Bp * LANE,
                           bytes_accessed=bytes_accessed)

    vmem = pl.BlockSpec(memory_space=pltpu.MemorySpace.VMEM)
    smem = pl.BlockSpec(memory_space=pltpu.MemorySpace.SMEM)

    logits_pad, loss = pl.pallas_call(
        _head_kernel,
        out_shape=(jax.ShapeDtypeStruct((Bp, LANE), jnp.float32),
                   jax.ShapeDtypeStruct((1, 1), jnp.float32)),
        in_specs=[vmem] * len(inputs),
        out_specs=(vmem, smem),
        cost_estimate=cost,
    )(*inputs)
    # TODO(synk): once B grows to >= 2 sublane tiles, add a batch-tiled grid with
    # dimension_semantics=("parallel",) so both v7x TensorCores get work.
    return logits_pad[:B, :NUM_LABELS], loss[0, 0]


# -----------------------------------------------------------------------------
# Glue (plain JAX): parameter init (with one-time kernel-oriented transforms)
# and a deterministic encoder stub.
# -----------------------------------------------------------------------------
def init_params(key):
    ks = jax.random.split(key, 6)

    def lin(k, din, dout):
        w = 0.02 * jax.random.normal(k, (din, dout), jnp.float32)  # stored as W^T of torch Linear
        b = jnp.zeros((1, dout), jnp.float32)
        return w, b

    wq, bq = lin(ks[0], HIDDEN, HIDDEN)
    wk, bk = lin(ks[1], HIDDEN, HIDDEN)
    wv, bv = lin(ks[2], HIDDEN, HIDDEN)
    wo, bo = lin(ks[3], HIDDEN, HIDDEN)
    w1, b1 = lin(ks[4], HIDDEN, FF)
    w2, b2 = lin(ks[5], FF, NUM_LABELS)

    # ---- one-time kernel-oriented transforms (exact in eval mode) -----------
    scale = 1.0 / math.sqrt(HEAD_DIM)

    def lane_pad(w, b):          # pad output features to a full 128-lane block
        wp = jnp.zeros((w.shape[0], LANE), jnp.float32).at[:, :w.shape[1]].set(w)
        bp = jnp.zeros((1, LANE), jnp.float32).at[:, :b.shape[1]].set(b)
        return wp, bp

    wq_p, bq_p = lane_pad(wq * scale, bq * scale)   # 1/sqrt(head_dim) folded into Q
    wk_p, bk_p = lane_pad(wk, bk)
    wv_p, bv_p = lane_pad(wv, bv)
    wqkv = jnp.concatenate([wq_p, wk_p, wv_p], axis=1)            # [H, 3*128]
    bqkv = jnp.concatenate([bq_p, bk_p, bv_p], axis=1)            # [1, 3*128]

    # block-diagonal head mask (per-head group-sum + broadcast), padded to 128x128
    idx = jnp.arange(HIDDEN)
    hm = (idx[:, None] // HEAD_DIM == idx[None, :] // HEAD_DIM).astype(jnp.float32)
    hmask = jnp.zeros((LANE, LANE), jnp.float32).at[:HIDDEN, :HIDDEN].set(hm)

    # fold the attention output projection into linear1 (dropout == identity)
    w_o1 = jnp.zeros((LANE, FF), jnp.float32).at[:HIDDEN].set(wo @ w1)   # [128,128]
    b_o1 = bo @ w1 + b1                                                  # [1,128]

    w2p = jnp.zeros((FF, LANE), jnp.float32).at[:, :NUM_LABELS].set(w2)  # [128,128]
    b2p = jnp.zeros((1, LANE), jnp.float32).at[:, :NUM_LABELS].set(b2)

    wbig = jnp.concatenate([hmask, w_o1, w2p], axis=1).astype(jnp.bfloat16)  # [128, 3*128]
    bias = jnp.concatenate([bqkv, b_o1, b2p], axis=1)                        # [1, 5*128] f32

    return dict(wqkv=wqkv.astype(jnp.bfloat16), wbig=wbig, bias=bias)


def stub_encoder_cls(emb_table, input_ids, attention_mask):
    # TODO(synk): stand-in for the pretrained HF encoders (bert_tab / bert_text);
    # produces a deterministic "[CLS]" vector per sequence via masked mean pooling.
    h = emb_table[input_ids]                                   # [..., seq, H]
    m = attention_mask[..., None].astype(jnp.float32)
    return (h * m).sum(axis=-2) / jnp.maximum(m.sum(axis=-2), 1.0)


# -----------------------------------------------------------------------------
if __name__ == "__main__":
    key = jax.random.PRNGKey(0)
    keys = jax.random.split(key, 10)

    B, S_TAB, S_TXT, SEQ_LEN, VOCAB = 2, 2, 2, 8, 100

    # forward() inputs
    input_ids_claim = jax.random.randint(keys[0], (B, SEQ_LEN), 0, VOCAB)
    attention_mask_claim = jnp.ones((B, SEQ_LEN), jnp.int32)
    input_ids_text = jax.random.randint(keys[1], (B, S_TXT, SEQ_LEN), 0, VOCAB)
    attention_mask_text = jnp.ones((B, S_TXT, SEQ_LEN), jnp.int32)
    input_ids_tab = jax.random.randint(keys[2], (B, S_TAB, SEQ_LEN), 0, VOCAB)
    attention_mask_tab = jnp.ones((B, S_TAB, SEQ_LEN), jnp.int32)
    labels = jax.random.randint(keys[3], (B,), 0, NUM_LABELS)
    class_weights = jnp.ones((NUM_LABELS,), jnp.float32)

    # deterministic stand-in embedding tables for the two backbones
    emb_text = 0.02 * jax.random.normal(keys[4], (VOCAB, HIDDEN), jnp.float32)
    emb_tab = 0.02 * jax.random.normal(keys[5], (VOCAB, HIDDEN), jnp.float32)

    params = init_params(keys[6])

    # ---- glue mirroring VerificationModel.forward ---------------------------
    table_cls = stub_encoder_cls(emb_tab, input_ids_tab, attention_mask_tab)       # [B, S_TAB, H]
    text_cls = stub_encoder_cls(emb_text, input_ids_text, attention_mask_text)     # [B, S_TXT, H]
    claim_cls = stub_encoder_cls(emb_text, input_ids_claim, attention_mask_claim)  # [B, H]

    evidence = jnp.concatenate([table_cls, text_cls], axis=1)                      # [B, S_TAB+S_TXT, H]

    logits, loss = verification_head(claim_cls, evidence, params, labels, class_weights)
    jax.block_until_ready((logits, loss))
    print("KERNEL_OK")
</pallas_src>

<mosaic_0001>
module attributes {stable_mosaic.version = 11 : i64} {
  func.func @_head_kernel(%arg0: memref<40x32xbf16, #tpu.memory_space<vmem>>, %arg1: memref<32x384xbf16, #tpu.memory_space<vmem>>, %arg2: memref<128x384xbf16, #tpu.memory_space<vmem>>, %arg3: memref<1x768xf32, #tpu.memory_space<vmem>>, %arg4: memref<8x1xi32, #tpu.memory_space<vmem>>, %arg5: memref<8x128xf32, #tpu.memory_space<vmem>>, %arg6: memref<1x1xf32, #tpu.memory_space<smem>>) attributes {dimension_semantics = [], scalar_prefetch = 0 : i64, scratch_operands = 0 : i64, tpu.core_type = #tpu.core_type<tc>} {
    %c0 = arith.constant 0 : index
    %c0_0 = arith.constant 0 : index
    %0 = vector.load %arg2[%c0, %c0_0] : memref<128x384xbf16, #tpu.memory_space<vmem>>, vector<128x128xbf16>
    %c0_1 = arith.constant 0 : index
    %c128 = arith.constant 128 : index
    %1 = vector.load %arg2[%c0_1, %c128] : memref<128x384xbf16, #tpu.memory_space<vmem>>, vector<128x128xbf16>
    %c0_2 = arith.constant 0 : index
    %c256 = arith.constant 256 : index
    %2 = vector.load %arg2[%c0_2, %c256] : memref<128x384xbf16, #tpu.memory_space<vmem>>, vector<128x128xbf16>
    %c0_3 = arith.constant 0 : index
    %c0_4 = arith.constant 0 : index
    %3 = vector.load %arg3[%c0_3, %c0_4] : memref<1x768xf32, #tpu.memory_space<vmem>>, vector<1x384xf32>
    %c0_5 = arith.constant 0 : index
    %c384 = arith.constant 384 : index
    %4 = vector.load %arg3[%c0_5, %c384] : memref<1x768xf32, #tpu.memory_space<vmem>>, vector<1x128xf32>
    %c0_6 = arith.constant 0 : index
    %c512 = arith.constant 512 : index
    %5 = vector.load %arg3[%c0_6, %c512] : memref<1x768xf32, #tpu.memory_space<vmem>>, vector<1x128xf32>
    %c0_7 = arith.constant 0 : index
    %c640 = arith.constant 640 : index
    %6 = vector.load %arg3[%c0_7, %c640] : memref<1x768xf32, #tpu.memory_space<vmem>>, vector<1x128xf32>
    %c0_8 = arith.constant 0 : index
    %c0_9 = arith.constant 0 : index
    %7 = vector.load %arg0[%c0_8, %c0_9] : memref<40x32xbf16, #tpu.memory_space<vmem>>, vector<40x32xbf16>
    %c0_10 = arith.constant 0 : index
    %c0_11 = arith.constant 0 : index
    %8 = vector.load %arg1[%c0_10, %c0_11] : memref<32x384xbf16, #tpu.memory_space<vmem>>, vector<32x384xbf16>
    %cst = arith.constant dense<0.000000e+00> : vector<40x384xf32>
    %9 = tpu.matmul %7, %8, %cst {dimension_numbers = #tpu.dot_dimension_numbers<[1], [0], [0], [1], [0, 0, 1, 1], [], []>} : vector<40x32xbf16>, vector<32x384xbf16>, vector<40x384xf32> -> vector<40x384xf32>
    %10 = vector.broadcast %3 : vector<1x384xf32> to vector<40x384xf32>
    %11 = arith.addf %9, %10 : vector<40x384xf32>
    %12 = vector.extract_strided_slice %11 {offsets = [0, 0], sizes = [8, 128], strides = [1, 1]} : vector<40x384xf32> to vector<8x128xf32>
    %13 = vector.extract_strided_slice %11 {offsets = [8, 128], sizes = [8, 128], strides = [1, 1]} : vector<40x384xf32> to vector<8x128xf32>
    %14 = vector.extract_strided_slice %11 {offsets = [8, 256], sizes = [8, 128], strides = [1, 1]} : vector<40x384xf32> to vector<8x128xf32>
    %15 = arith.mulf %12, %13 : vector<8x128xf32>
    %16 = arith.truncf %15 : vector<8x128xf32> to vector<8x128xbf16>
    %cst_12 = arith.constant dense<0.000000e+00> : vector<8x128xf32>
    %17 = tpu.matmul %16, %0, %cst_12 {dimension_numbers = #tpu.dot_dimension_numbers<[1], [0], [0], [1], [0, 0, 1, 1], [], []>} : vector<8x128xbf16>, vector<128x128xbf16>, vector<8x128xf32> -> vector<8x128xf32>
    %18 = vector.extract_strided_slice %11 {offsets = [16, 128], sizes = [8, 128], strides = [1, 1]} : vector<40x384xf32> to vector<8x128xf32>
    %19 = vector.extract_strided_slice %11 {offsets = [16, 256], sizes = [8, 128], strides = [1, 1]} : vector<40x384xf32> to vector<8x128xf32>
    %20 = arith.mulf %12, %18 : vector<8x128xf32>
    %21 = arith.truncf %20 : vector<8x128xf32> to vector<8x128xbf16>
    %cst_13 = arith.constant dense<0.000000e+00> : vector<8x128xf32>
    %22 = tpu.matmul %21, %0, %cst_13 {dimension_numbers = #tpu.dot_dimension_numbers<[1], [0], [0], [1], [0, 0, 1, 1], [], []>} : vector<8x128xbf16>, vector<128x128xbf16>, vector<8x128xf32> -> vector<8x128xf32>
    %23 = vector.extract_strided_slice %11 {offsets = [24, 128], sizes = [8, 128], strides = [1, 1]} : vector<40x384xf32> to vector<8x128xf32>
    %24 = vector.extract_strided_slice %11 {offsets = [24, 256], sizes = [8, 128], strides = [1, 1]} : vector<40x384xf32> to vector<8x128xf32>
    %25 = arith.mulf %12, %23 : vector<8x128xf32>
    %26 = arith.truncf %25 : vector<8x128xf32> to vector<8x128xbf16>
    %cst_14 = arith.constant dense<0.000000e+00> : vector<8x128xf32>
    %27 = tpu.matmul %26, %0, %cst_14 {dimension_numbers = #tpu.dot_dimension_numbers<[1], [0], [0], [1], [0, 0, 1, 1], [], []>} : vector<8x128xbf16>, vector<128x128xbf16>, vector<8x128xf32> -> vector<8x128xf32>
    %28 = vector.extract_strided_slice %11 {offsets = [32, 128], sizes = [8, 128], strides = [1, 1]} : vector<40x384xf32> to vector<8x128xf32>
    %29 = vector.extract_strided_slice %11 {offsets = [32, 256], sizes = [8, 128], strides = [1, 1]} : vector<40x384xf32> to vector<8x128xf32>
    %30 = arith.mulf %12, %28 : vector<8x128xf32>
    %31 = arith.truncf %30 : vector<8x128xf32> to vector<8x128xbf16>
    %cst_15 = arith.constant dense<0.000000e+00> : vector<8x128xf32>
    %32 = tpu.matmul %31, %0, %cst_15 {dimension_numbers = #tpu.dot_dimension_numbers<[1], [0], [0], [1], [0, 0, 1, 1], [], []>} : vector<8x128xbf16>, vector<128x128xbf16>, vector<8x128xf32> -> vector<8x128xf32>
    %33 = arith.maximumf %17, %22 : vector<8x128xf32>
    %34 = arith.maximumf %33, %27 : vector<8x128xf32>
    %35 = arith.maximumf %34, %32 : vector<8x128xf32>
    %36 = arith.subf %17, %35 : vector<8x128xf32>
    %37 = math.exp %36 : vector<8x128xf32>
    %38 = arith.subf %22, %35 : vector<8x128xf32>
    %39 = math.exp %38 : vector<8x128xf32>
    %40 = arith.subf %27, %35 : vector<8x128xf32>
    %41 = math.exp %40 : vector<8x128xf32>
    %42 = arith.subf %32, %35 : vector<8x128xf32>
    %43 = math.exp %42 : vector<8x128xf32>
    %44 = arith.mulf %37, %14 : vector<8x128xf32>
    %45 = arith.addf %37, %39 : vector<8x128xf32>
    %46 = arith.mulf %39, %19 : vector<8x128xf32>
    %47 = arith.addf %44, %46 : vector<8x128xf32>
    %48 = arith.addf %45, %41 : vector<8x128xf32>
    %49 = arith.mulf %41, %24 : vector<8x128xf32>
    %50 = arith.addf %47, %49 : vector<8x128xf32>
    %51 = arith.addf %48, %43 : vector<8x128xf32>
    %52 = arith.mulf %43, %29 : vector<8x128xf32>
    %53 = arith.addf %50, %52 : vector<8x128xf32>
    %54 = tpu.reciprocal %51 {approx = true} : vector<8x128xf32> -> vector<8x128xf32>
    %55 = arith.mulf %53, %54 : vector<8x128xf32>
    %56 = arith.truncf %55 : vector<8x128xf32> to vector<8x128xbf16>
    %cst_16 = arith.constant dense<0.000000e+00> : vector<8x128xf32>
    %57 = tpu.matmul %56, %1, %cst_16 {dimension_numbers = #tpu.dot_dimension_numbers<[1], [0], [0], [1], [0, 0, 1, 1], [], []>} : vector<8x128xbf16>, vector<128x128xbf16>, vector<8x128xf32> -> vector<8x128xf32>
    %58 = vector.broadcast %4 : vector<1x128xf32> to vector<8x128xf32>
    %59 = arith.addf %57, %58 : vector<8x128xf32>
    %cst_17 = arith.constant 0.000000e+00 : f32
    %60 = vector.broadcast %cst_17 : f32 to vector<8x128xf32>
    %61 = arith.maximumf %59, %60 : vector<8x128xf32>
    %62 = arith.truncf %61 : vector<8x128xf32> to vector<8x128xbf16>
    %cst_18 = arith.constant dense<0.000000e+00> : vector<8x128xf32>
    %63 = tpu.matmul %62, %2, %cst_18 {dimension_numbers = #tpu.dot_dimension_numbers<[1], [0], [0], [1], [0, 0, 1, 1], [], []>} : vector<8x128xbf16>, vector<128x128xbf16>, vector<8x128xf32> -> vector<8x128xf32>
    %64 = vector.broadcast %5 : vector<1x128xf32> to vector<8x128xf32>
    %65 = arith.addf %63, %64 : vector<8x128xf32>
    %c0_19 = arith.constant 0 : index
    %c0_20 = arith.constant 0 : index
    %66 = vector.load %arg5[%c0_19, %c0_20] : memref<8x128xf32, #tpu.memory_space<vmem>>, vector<8x128xf32>
    tpu.vector_store %arg5[%c0_19, %c0_20], %65 {strides = array<i32>} : memref<8x128xf32, #tpu.memory_space<vmem>>, vector<8x128xf32>,
    %67 = tpu.iota {dimensions = array<i32: 1>} : vector<8x128xi32>
    %c3_i32 = arith.constant 3 : i32
    %68 = vector.broadcast %c3_i32 : i32 to vector<8x128xi32>
    %69 = arith.cmpi slt, %67, %68 : vector<8x128xi32>
    %cst_21 = arith.constant -1.000000e+30 : f32
    %70 = vector.broadcast %cst_21 : f32 to vector<8x128xf32>
    %71 = arith.select %69, %65, %70 : vector<8x128xi1>, vector<8x128xf32>
    %cst_22 = arith.constant dense<0xFF800000> : vector<8xf32>
    %72 = vector.multi_reduction <maximumf>, %71, %cst_22 [1] : vector<8x128xf32> to vector<8xf32>
    %73 = vector.shape_cast %72 : vector<8xf32> to vector<8x1xf32>
    %74 = vector.broadcast %73 : vector<8x1xf32> to vector<8x128xf32>
    %75 = arith.subf %71, %74 : vector<8x128xf32>
    %76 = math.exp %75 : vector<8x128xf32>
    %cst_23 = arith.constant dense<0.000000e+00> : vector<8xf32>
    %77 = vector.multi_reduction <add>, %76, %cst_23 [1] : vector<8x128xf32> to vector<8xf32>
    %78 = vector.shape_cast %77 : vector<8xf32> to vector<8x1xf32>
    %79 = math.log %78 : vector<8x1xf32>
    %80 = arith.addf %79, %73 : vector<8x1xf32>
    %81 = vector.broadcast %80 : vector<8x1xf32> to vector<8x128xf32>
    %82 = arith.subf %71, %81 : vector<8x128xf32>
    %c0_24 = arith.constant 0 : index
    %c0_25 = arith.constant 0 : index
    %83 = vector.load %arg4[%c0_24, %c0_25] : memref<8x1xi32, #tpu.memory_space<vmem>>, vector<8x1xi32>
    %84 = vector.broadcast %83 : vector<8x1xi32> to vector<8x128xi32>
    %85 = arith.cmpi eq, %67, %84 : vector<8x128xi32>
    %86 = arith.extui %85 : vector<8x128xi1> to vector<8x128xi32>
    %87 = arith.sitofp %86 : vector<8x128xi32> to vector<8x128xf32>
    %c0_i32 = arith.constant 0 : i32
    %88 = vector.broadcast %c0_i32 : i32 to vector<8x1xi32>
    %89 = arith.cmpi sge, %83, %88 : vector<8x1xi32>
    %90 = arith.extui %89 : vector<8x1xi1> to vector<8x1xi32>
    %91 = arith.sitofp %90 : vector<8x1xi32> to vector<8x1xf32>
    %92 = vector.broadcast %6 : vector<1x128xf32> to vector<8x128xf32>
    %93 = arith.mulf %87, %92 : vector<8x128xf32>
    %cst_26 = arith.constant dense<0.000000e+00> : vector<8xf32>
    %94 = vector.multi_reduction <add>, %93, %cst_26 [1] : vector<8x128xf32> to vector<8xf32>
    %95 = vector.shape_cast %94 : vector<8xf32> to vector<8x1xf32>
    %96 = arith.mulf %87, %82 : vector<8x128xf32>
    %cst_27 = arith.constant dense<0.000000e+00> : vector<8xf32>
    %97 = vector.multi_reduction <add>, %96, %cst_27 [1] : vector<8x128xf32> to vector<8xf32>
    %98 = vector.shape_cast %97 : vector<8xf32> to vector<8x1xf32>
    %cst_28 = arith.constant 0.000000e+00 : f32
    %99 = vector.broadcast %cst_28 : f32 to vector<8x1xf32>
    %100 = arith.subf %99, %98 : vector<8x1xf32>
    %101 = vector.broadcast %6 : vector<1x128xf32> to vector<8x128xf32>
    %102 = arith.mulf %82, %101 : vector<8x128xf32>
    %cst_29 = arith.constant dense<0.000000e+00> : vector<8xf32>
    %103 = vector.multi_reduction <add>, %102, %cst_29 [1] : vector<8x128xf32> to vector<8xf32>
    %104 = vector.shape_cast %103 : vector<8xf32> to vector<8x1xf32>
    %cst_30 = arith.constant 0.000000e+00 : f32
    %105 = vector.broadcast %cst_30 : f32 to vector<8x1xf32>
    %106 = arith.subf %105, %104 : vector<8x1xf32>
    %107 = arith.mulf %106, %91 : vector<8x1xf32>
    %108 = vector.shape_cast %95 : vector<8x1xf32> to vector<1x8x1xf32>
    %cst_31 = arith.constant dense<0.000000e+00> : vector<1xf32>
    %109 = vector.multi_reduction <add>, %108, %cst_31 [1, 2] : vector<1x8x1xf32> to vector<1xf32>
    %110 = vector.shape_cast %109 : vector<1xf32> to vector<1x1x1xf32>
    %111 = vector.extract %110[0, 0, 0] : f32 from vector<1x1x1xf32>
    %112 = arith.mulf %95, %100 : vector<8x1xf32>
    %113 = vector.shape_cast %112 : vector<8x1xf32> to vector<1x8x1xf32>
    %cst_32 = arith.constant dense<0.000000e+00> : vector<1xf32>
    %114 = vector.multi_reduction <add>, %113, %cst_32 [1, 2] : vector<1x8x1xf32> to vector<1xf32>
    %115 = vector.shape_cast %114 : vector<1xf32> to vector<1x1x1xf32>
    %116 = vector.extract %115[0, 0, 0] : f32 from vector<1x1x1xf32>
    %cst_33 = arith.constant 0.899999976 : f32
    %117 = arith.mulf %cst_33, %116 : f32
    %118 = vector.shape_cast %107 : vector<8x1xf32> to vector<1x8x1xf32>
    %cst_34 = arith.constant dense<0.000000e+00> : vector<1xf32>
    %119 = vector.multi_reduction <add>, %118, %cst_34 [1, 2] : vector<1x8x1xf32> to vector<1xf32>
    %120 = vector.shape_cast %119 : vector<1xf32> to vector<1x1x1xf32>
    %121 = vector.extract %120[0, 0, 0] : f32 from vector<1x1x1xf32>
    %cst_35 = arith.constant 0.0333333351 : f32
    %122 = arith.mulf %cst_35, %121 : f32
    %123 = arith.addf %117, %122 : f32
    %124 = arith.divf %123, %111 : f32
    %c0_36 = arith.constant 0 : index
    %c0_37 = arith.constant 0 : index
    %125 = memref.load %arg6[%c0_36, %c0_37] : memref<1x1xf32, #tpu.memory_space<smem>>
    memref.store %124, %arg6[%c0_36, %c0_37] : memref<1x1xf32, #tpu.memory_space<smem>>
    return
  }
}

</mosaic_0001>

<llo_original>
// kernel: verification_head.1
$region0: #{verification_head.1}
  #allocation0 [shape = 'u32[]', space=smem, size = 0x4, offset = 0x4, fixed_abs, tag = 'smem constant byte address 0x4 - core index']
  #allocation1 [shape = 'u32[72,128]{1,0:T(1,128)}', space=vmem, size = 0x9000, scoped, tag = 'internal scratch']
  %s0 = inlined_call_operand.vmem [shape: bf16[40,32], index: 0, kind: input, shape index: {}]
  %s1 = inlined_call_operand.vmem [shape: bf16[32,384], index: 1, kind: input, shape index: {}]
  %s2 = inlined_call_operand.hbm [shape: bf16[128,384], index: 2, kind: input, shape index: {}]
  %s3 = inlined_call_operand.vmem [shape: f32[1,768], index: 3, kind: input, shape index: {}]
  %s4 = inlined_call_operand.vmem [shape: s32[8,1], index: 4, kind: input, shape index: {}]
  %s5 = inlined_call_operand.vmem [shape: f32[8,128], index: 5, kind: output, shape index: {0}]
  %s6 = inlined_call_operand.hbm [shape: f32[1,1], index: 6, kind: output, shape index: {1}]
  %7 = xla_tuple %s5, %s6
  %s8 = sld [smem:[#allocation0]]
  $region42: #{verification_head.1} parent=0
    _
  %s10 = ssub.s32 1, %s8
  %s11 = scalar_select 0, %s10, %s8
  $region1: #{verification_head.1} parent=0
    #allocation2 [shape = 'u8[98304]{0}', space=vmem, size = 0x18000, scoped, tag = 'input window, operand 2, single buffered']
    #allocation3 [shape = 's32[1]{0}', space=sflag, size = 0x4, scoped, tag = 'scoped memory for verification_head.1']
    #allocation4 [shape = 's32[1]{0}', space=sflag, size = 0x4, scoped, tag = 'scoped memory for verification_head.1']
    #allocation5 [shape = 'u8[512]{0}', space=smem, size = 0x200, scoped, tag = 'output window, operand 1, single buffered']
    %12 = vsyncpa [#allocation3], 0
    %13 = vsyncpa [#allocation4], 0
    // Predicated region
    $region2: #{verification_head.1} parent=1 // pred_check
      _
    $region3: #{verification_head.1} parent=1 // pred_check_branch
      %15 = sbr.rel (0) target = $region5
    $region4: #{verification_head.1} parent=1 // pred_region
      _
    $region5: #{verification_head.1} parent=1 // pred_fallthru
      _
    // Predicated region
    $region6: #{verification_head.1} parent=1 // pred_check
      _
    $region7: #{verification_head.1} parent=1 // pred_check_branch
      %17 = sbr.rel (0) target = $region9
    $region8: #{verification_head.1} parent=1 // pred_region
      _
    $region9: #{verification_head.1} parent=1 // pred_fallthru
      _
    // Predicated region
    $region10: #{verification_head.1} parent=1 // pred_check
      _
    $region11: #{verification_head.1} parent=1 // pred_check_branch
      %19 = sbr.rel (0) target = $region13
    $region12: #{verification_head.1} parent=1 // pred_region
      %21 = vsyncadd [#allocation3], 0
      %s22 = sshll.u32 %s2, 4
      %s23 = int_to_ptr.hbm [resolvable:$true] %s22
      %s24 = sshll.u32 [#allocation2], 4
      %s25 = int_to_ptr.vmem [resolvable:$true] %s24
      %30 = dma.hbm_to_vmem [thread:$0]  %s23, 3072, %s25, [#allocation3], 192, 192, 12
    $region13: #{verification_head.1} parent=1 // pred_fallthru
      _
    // Predicated region
    $region14: #{verification_head.1} parent=1 // pred_check
      _
    $region15: #{verification_head.1} parent=1 // pred_check_branch
      %32 = sbr.rel (0) target = $region17
    $region16: #{verification_head.1} parent=1 // pred_region
      _
    $region17: #{verification_head.1} parent=1 // pred_fallthru
      _
    // Predicated region
    $region18: #{verification_head.1} parent=1 // pred_check
      _
    $region19: #{verification_head.1} parent=1 // pred_check_branch
      %34 = sbr.rel (0) target = $region21
    $region20: #{verification_head.1} parent=1 // pred_region
      _
    $region21: #{verification_head.1} parent=1 // pred_fallthru
      _
    // Predicated region
    $region22: #{verification_head.1} parent=1 // pred_check
      _
    $region23: #{verification_head.1} parent=1 // pred_check_branch
      %36 = sbr.rel (0) target = $region25
    $region24: #{verification_head.1} parent=1 // pred_region
      %38 = dma.done [#allocation3], 3072
    $region25: #{verification_head.1} parent=1 // pred_fallthru
      _
    %v40 = vld [vmem:[#allocation2] sm:$0xf]
    %v41 = vld [vmem:[#allocation2 + $0xc] sm:$0xf]
    %v42 = vld [vmem:[#allocation2 + $0x18] sm:$0xf]
    %v43 = vld [vmem:[#allocation2 + $0x24] sm:$0xf]
    %v44 = vld [vmem:[#allocation2 + $0x30] sm:$0xf]
    %v45 = vld [vmem:[#allocation2 + $0x3c] sm:$0xf]
    %v46 = vld [vmem:[#allocation2 + $0x48] sm:$0xf]
    %v47 = vld [vmem:[#allocation2 + $0x54] sm:$0xf]
    %v48 = vld [vmem:[#allocation2 + $0x60] sm:$0xf]
    %v49 = vld [vmem:[#allocation2 + $0x6c] sm:$0xf]
    %v50 = vld [vmem:[#allocation2 + $0x78] sm:$0xf]
    %v51 = vld [vmem:[#allocation2 + $0x84] sm:$0xf]
    %v52 = vld [vmem:[#allocation2 + $0x90] sm:$0xf]
    %v53 = vld [vmem:[#allocation2 + $0x9c] sm:$0xf]
    %v54 = vld [vmem:[#allocation2 + $0xa8] sm:$0xf]
    %v55 = vld [vmem:[#allocation2 + $0xb4] sm:$0xf]
    %v56 = vld [vmem:[#allocation2 + $0x4] sm:$0xf]
    %v57 = vld [vmem:[#allocation2 + $0x10] sm:$0xf]
    %v58 = vld [vmem:[#allocation2 + $0x1c] sm:$0xf]
    %v59 = vld [vmem:[#allocation2 + $0x28] sm:$0xf]
    %v60 = vld [vmem:[#allocation2 + $0x34] sm:$0xf]
    %v61 = vld [vmem:[#allocation2 + $0x40] sm:$0xf]
    %v62 = vld [vmem:[#allocation2 + $0x4c] sm:$0xf]
    %v63 = vld [vmem:[#allocation2 + $0x58] sm:$0xf]
    %v64 = vld [vmem:[#allocation2 + $0x64] sm:$0xf]
    %v65 = vld [vmem:[#allocation2 + $0x70] sm:$0xf]
    %v66 = vld [vmem:[#allocation2 + $0x7c] sm:$0xf]
    %v67 = vld [vmem:[#allocation2 + $0x88] sm:$0xf]
    %v68 = vld [vmem:[#allocation2 + $0x94] sm:$0xf]
    %v69 = vld [vmem:[#allocation2 + $0xa0] sm:$0xf]
    %v70 = vld [vmem:[#allocation2 + $0xac] sm:$0xf]
    %v71 = vld [vmem:[#allocation2 + $0xb8] sm:$0xf]
    %v72 = vld [vmem:[#allocation2 + $0x8] sm:$0xf]
    %v73 = vld [vmem:[#allocation2 + $0x14] sm:$0xf]
    %v74 = vld [vmem:[#allocation2 + $0x20] sm:$0xf]
    %v75 = vld [vmem:[#allocation2 + $0x2c] sm:$0xf]
    %v76 = vld [vmem:[#allocation2 + $0x38] sm:$0xf]
    %v77 = vld [vmem:[#allocation2 + $0x44] sm:$0xf]
    %v78 = vld [vmem:[#allocation2 + $0x50] sm:$0xf]
    %v79 = vld [vmem:[#allocation2 + $0x5c] sm:$0xf]
    %v80 = vld [vmem:[#allocation2 + $0x68] sm:$0xf]
    %v81 = vld [vmem:[#allocation2 + $0x74] sm:$0xf]
    %v82 = vld [vmem:[#allocation2 + $0x80] sm:$0xf]
    %v83 = vld [vmem:[#allocation2 + $0x8c] sm:$0xf]
    %v84 = vld [vmem:[#allocation2 + $0x98] sm:$0xf]
    %v85 = vld [vmem:[#allocation2 + $0xa4] sm:$0xf]
    %v86 = vld [vmem:[#allocation2 + $0xb0] sm:$0xf]
    %v87 = vld [vmem:[#allocation2 + $0xbc] sm:$0xf]
    %v88 = vld [vmem:[%s3] sm:$0x7]
    %v89 = vld [vmem:[%s3 + $0x3] sm:$0x1]
    %v90 = vld [vmem:[%s3 + $0x4] sm:$0x1]
    %v91 = vld [vmem:[%s3 + $0x5] sm:$0x1]
    %v92 = vld [vmem:[%s0] sm:$0xf]
    %v93 = vld [vmem:[%s0 + $0x4] sm:$0xf]
    %v94 = vld [vmem:[%s0 + $0x8] sm:$0xf]
    %v95 = vld [vmem:[%s0 + $0xc] sm:$0xf]
    %v96 = vld [vmem:[%s0 + $0x10] sm:$0xf]
    %v97 = vld [vmem:[%s1] sm:$0xff]
    %v98 = vld [vmem:[%s1 + $0x8] sm:$0xf]
    %v99 = vld [vmem:[%s1 + $0xc] sm:$0xff]
    %v100 = vld [vmem:[%s1 + $0x14] sm:$0xf]
    %v101 = vld [vmem:[%s1 + $0x18] sm:$0xff]
    %v102 = vld [vmem:[%s1 + $0x20] sm:$0xf]
    %v103 = vld [vmem:[%s1 + $0x24] sm:$0xff]
    %v104 = vld [vmem:[%s1 + $0x2c] sm:$0xf]
    %v106 = vperm.slane %v88, 0
    %v107 = vperm.slane %v88, 1
    %v108 = vperm.slane %v88, 2
    %v117 = vunpack.c.l.b16 %v92
    %v118 = vunpack.c.l.b16 %v93
    %v119 = vunpack.c.l.b16 %v94
    %v120 = vunpack.c.l.b16 %v95
    %v121 = vunpack.c.l.b16 %v96
    %v122 = vpack.c.b16 %v118, %v117
    %v123 = vpack.c.b16 %v120, %v119
    %v124 = vpack.c.b16 %v121, %v121
    %v133 = vunpack.c.l.b16 %v97
    %v134 = vunpack.c.h.b16 %v97
    %v135 = vunpack.c.l.b16 %v98
    %v136 = vunpack.c.l.b16 %v99
    %v137 = vunpack.c.h.b16 %v99
    %v138 = vunpack.c.l.b16 %v100
    %v139 = vunpack.c.l.b16 %v101
    %v140 = vunpack.c.h.b16 %v101
    %v141 = vunpack.c.l.b16 %v102
    %v142 = vunpack.c.l.b16 %v103
    %v143 = vunpack.c.h.b16 %v103
    %v144 = vunpack.c.l.b16 %v104
    %v145 = vpack.c.b16 %v136, %v133
    %v146 = vpack.c.b16 %v137, %v134
    %v147 = vpack.c.b16 %v138, %v135
    %v148 = vpack.c.b16 %v142, %v139
    %v149 = vpack.c.b16 %v143, %v140
    %v150 = vpack.c.b16 %v144, %v141
    %vm157 = vcmask 261120
    %v159 = vsel %vm157, %v122, 0
    %v162 = vsel %vm157, %v123, 0
    %v165 = vsel %vm157, %v124, 0
    %167 = vmatpush.bf16.msra.mxu0 0
    %168 = vmatpush.bf16.msra.mxu0 0
    %169 = vmatpush.bf16.msra.mxu0 0
    %170 = vmatpush.bf16.msra.mxu0 0
    %171 = vmatpush.bf16.msra.mxu0 0
    %172 = vmatpush.bf16.msra.mxu0 0
    %173 = vmatpush.bf16.msra.mxu0 %v148
    %174 = vmatpush.bf16.msra.mxu0 %v145
    %175 = vmatmul.bf16.gmra.mxu0 %v159
    %v176 = vpop.f32.mrf.mxu0
    %v177 = vadd.f32 %v106, %v176
    %v178 = vpop.f32.mrf.mxu0
    %179 = vmatmul.bf16.gmra.mxu0 %v162
    %v180 = vpop.f32.mrf.mxu0
    %v181 = vpop.f32.mrf.mxu0
    %182 = vmatmul.bf16.gmra.mxu0 %v165
    %v183 = vpop.f32.mrf.mxu0
    %v184 = vpop.f32.mrf.mxu0
    %185 = vdwg.mxu0
    %186 = vmatpush.bf16.msra.mxu0 0
    %187 = vmatpush.bf16.msra.mxu0 0
    %188 = vmatpush.bf16.msra.mxu0 0
    %189 = vmatpush.bf16.msra.mxu0 0
    %190 = vmatpush.bf16.msra.mxu0 0
    %191 = vmatpush.bf16.msra.mxu0 0
    %192 = vmatpush.bf16.msra.mxu0 %v149
    %193 = vmatpush.bf16.msra.mxu0 %v146
    %194 = vmatmul.bf16.gmra.mxu0 %v159
    %v195 = vpop.f32.mrf.mxu0
    %v196 = vpop.f32.mrf.mxu0
    %v197 = vadd.f32 %v107, %v196
    %198 = vmatmul.bf16.gmra.mxu0 %v162
    %v199 = vpop.f32.mrf.mxu0
    %v200 = vadd.f32 %v107, %v199
    %v201 = vpop.f32.mrf.mxu0
    %v202 = vadd.f32 %v107, %v201
    %203 = vmatmul.bf16.gmra.mxu0 %v165
    %v204 = vpop.f32.mrf.mxu0
    %v205 = vadd.f32 %v107, %v204
    %v206 = vpop.f32.mrf.mxu0
    %207 = vdwg.mxu0
    %208 = vmatpush.bf16.msra.mxu0 0
    %209 = vmatpush.bf16.msra.mxu0 0
    %210 = vmatpush.bf16.msra.mxu0 0
    %211 = vmatpush.bf16.msra.mxu0 0
    %212 = vmatpush.bf16.msra.mxu0 0
    %213 = vmatpush.bf16.msra.mxu0 0
    %214 = vmatpush.bf16.msra.mxu0 %v150
    %215 = vmatpush.bf16.msra.mxu0 %v147
    %216 = vmatmul.bf16.gmra.mxu0 %v159
    %v217 = vpop.f32.mrf.mxu0
    %v218 = vpop.f32.mrf.mxu0
    %v219 = vadd.f32 %v108, %v218
    %220 = vmatmul.bf16.gmra.mxu0 %v162
    %v221 = vpop.f32.mrf.mxu0
    %v222 = vadd.f32 %v108, %v221
    %v223 = vpop.f32.mrf.mxu0
    %v224 = vadd.f32 %v108, %v223
    %225 = vmatmul.bf16.gmra.mxu0 %v165
    %v226 = vpop.f32.mrf.mxu0
    %v227 = vadd.f32 %v108, %v226
    %v228 = vpop.f32.mrf.mxu0
    %229 = vdwg.mxu0
    %v230 = vmul.f32 %v177, %v197
    %v231 = vpack.c.bf16 %v230, %v230
    %v248 = vunpack.c.l.b16 %v40
    %v249 = vunpack.c.l.b16 %v41
    %v250 = vunpack.c.l.b16 %v42
    %v251 = vunpack.c.l.b16 %v43
    %v252 = vunpack.c.l.b16 %v44
    %v253 = vunpack.c.l.b16 %v45
    %v254 = vunpack.c.l.b16 %v46
    %v255 = vunpack.c.l.b16 %v47
    %v256 = vunpack.c.l.b16 %v48
    %v257 = vunpack.c.l.b16 %v49
    %v258 = vunpack.c.l.b16 %v50
    %v259 = vunpack.c.l.b16 %v51
    %v260 = vunpack.c.l.b16 %v52
    %v261 = vunpack.c.l.b16 %v53
    %v262 = vunpack.c.l.b16 %v54
    %v263 = vunpack.c.l.b16 %v55
    %v264 = vpack.c.b16 %v249, %v248
    %v265 = vpack.c.b16 %v251, %v250
    %v266 = vpack.c.b16 %v253, %v252
    %v267 = vpack.c.b16 %v255, %v254
    %v268 = vpack.c.b16 %v257, %v256
    %v269 = vpack.c.b16 %v259, %v258
    %v270 = vpack.c.b16 %v261, %v260
    %v271 = vpack.c.b16 %v263, %v262
    %280 = vmatpush.bf16.msra.mxu0 %v271
    %281 = vmatpush.bf16.msra.mxu0 %v270
    %282 = vmatpush.bf16.msra.mxu0 %v269
    %283 = vmatpush.bf16.msra.mxu0 %v268
    %284 = vmatpush.bf16.msra.mxu0 %v267
    %285 = vmatpush.bf16.msra.mxu0 %v266
    %286 = vmatpush.bf16.msra.mxu0 %v265
    %287 = vmatpush.bf16.msra.mxu0 %v264
    %288 = vmatmul.bf16.gmra.mxu0 %v231
    %v289 = vpop.f32.mrf.mxu0
    %v290 = vadd.f32 0.0, %v289
    %v291 = vpop.f32.mrf.mxu0
    %292 = vdwg.mxu0
    %v293 = vmul.f32 %v177, %v200
    %v294 = vpack.c.bf16 %v293, %v293
    %295 = vmatpush.bf16.msra.mxu0 %v271
    %296 = vmatpush.bf16.msra.mxu0 %v270
    %297 = vmatpush.bf16.msra.mxu0 %v269
    %298 = vmatpush.bf16.msra.mxu0 %v268
    %299 = vmatpush.bf16.msra.mxu0 %v267
    %300 = vmatpush.bf16.msra.mxu0 %v266
    %301 = vmatpush.bf16.msra.mxu0 %v265
    %302 = vmatpush.bf16.msra.mxu0 %v264
    %303 = vmatmul.bf16.gmra.mxu0 %v294
    %v304 = vpop.f32.mrf.mxu0
    %v305 = vadd.f32 0.0, %v304
    %v306 = vpop.f32.mrf.mxu0
    %307 = vdwg.mxu0
    %v308 = vmul.f32 %v177, %v202
    %v309 = vpack.c.bf16 %v308, %v308
    %310 = vmatpush.bf16.msra.mxu0 %v271
    %311 = vmatpush.bf16.msra.mxu0 %v270
    %312 = vmatpush.bf16.msra.mxu0 %v269
    %313 = vmatpush.bf16.msra.mxu0 %v268
    %314 = vmatpush.bf16.msra.mxu0 %v267
    %315 = vmatpush.bf16.msra.mxu0 %v266
    %316 = vmatpush.bf16.msra.mxu0 %v265
    %317 = vmatpush.bf16.msra.mxu0 %v264
    %318 = vmatmul.bf16.gmra.mxu0 %v309
    %v319 = vpop.f32.mrf.mxu0
    %v320 = vadd.f32 0.0, %v319
    %v321 = vpop.f32.mrf.mxu0
    %322 = vdwg.mxu0
    %v323 = vmul.f32 %v177, %v205
    %v324 = vpack.c.bf16 %v323, %v323
    %325 = vmatpush.bf16.msra.mxu0 %v271
    %326 = vmatpush.bf16.msra.mxu0 %v270
    %327 = vmatpush.bf16.msra.mxu0 %v269
    %328 = vmatpush.bf16.msra.mxu0 %v268
    %329 = vmatpush.bf16.msra.mxu0 %v267
    %330 = vmatpush.bf16.msra.mxu0 %v266
    %331 = vmatpush.bf16.msra.mxu0 %v265
    %332 = vmatpush.bf16.msra.mxu0 %v264
    %333 = vmatmul.bf16.gmra.mxu0 %v324
    %v334 = vpop.f32.mrf.mxu0
    %v335 = vadd.f32 0.0, %v334
    %v336 = vpop.f32.mrf.mxu0
    %337 = vdwg.mxu0
    %v338 = vmax.f32 %v290, %v305
    %v339 = vmax.f32 %v338, %v320
    %v340 = vmax.f32 %v339, %v335
    %v341 = vsub.f32 %v290, %v340
    %v342 = vmul.f32 %v341, 1.442695
    %v343 = vpow.pop %v342
    %v344 = vsub.f32 %v305, %v340
    %v345 = vmul.f32 %v344, 1.442695
    %v346 = vpow.pop %v345
    %v347 = vsub.f32 %v320, %v340
    %v348 = vmul.f32 %v347, 1.442695
    %v349 = vpow.pop %v348
    %v350 = vsub.f32 %v335, %v340
    %v351 = vmul.f32 %v350, 1.442695
    %v352 = vpow.pop %v351
    %v353 = vmul.f32 %v343, %v219
    %v354 = vadd.f32 %v343, %v346
    %v355 = vmul.f32 %v346, %v222
    %v356 = vadd.f32 %v353, %v355
    %v357 = vadd.f32 %v354, %v349
    %v358 = vmul.f32 %v349, %v224
    %v359 = vadd.f32 %v356, %v358
    %v360 = vadd.f32 %v357, %v352
    %v361 = vmul.f32 %v352, %v227
    %v362 = vadd.f32 %v359, %v361
    %v363 = vrcp.pop %v360
    %v364 = vmul.f32 %v362, %v363
    %v365 = vpack.c.bf16 %v364, %v364
    %v367 = vperm.slane %v89, 0
    %v385 = vunpack.c.l.b16 %v56
    %v386 = vunpack.c.l.b16 %v57
    %v387 = vunpack.c.l.b16 %v58
    %v388 = vunpack.c.l.b16 %v59
    %v389 = vunpack.c.l.b16 %v60
    %v390 = vunpack.c.l.b16 %v61
    %v391 = vunpack.c.l.b16 %v62
    %v392 = vunpack.c.l.b16 %v63
    %v393 = vunpack.c.l.b16 %v64
    %v394 = vunpack.c.l.b16 %v65
    %v395 = vunpack.c.l.b16 %v66
    %v396 = vunpack.c.l.b16 %v67
    %v397 = vunpack.c.l.b16 %v68
    %v398 = vunpack.c.l.b16 %v69
    %v399 = vunpack.c.l.b16 %v70
    %v400 = vunpack.c.l.b16 %v71
    %v401 = vpack.c.b16 %v386, %v385
    %v402 = vpack.c.b16 %v388, %v387
    %v403 = vpack.c.b16 %v390, %v389
    %v404 = vpack.c.b16 %v392, %v391
    %v405 = vpack.c.b16 %v394, %v393
    %v406 = vpack.c.b16 %v396, %v395
    %v407 = vpack.c.b16 %v398, %v397
    %v408 = vpack.c.b16 %v400, %v399
    %417 = vmatpush.bf16.msra.mxu0 %v408
    %418 = vmatpush.bf16.msra.mxu0 %v407
    %419 = vmatpush.bf16.msra.mxu0 %v406
    %420 = vmatpush.bf16.msra.mxu0 %v405
    %421 = vmatpush.bf16.msra.mxu0 %v404
    %422 = vmatpush.bf16.msra.mxu0 %v403
    %423 = vmatpush.bf16.msra.mxu0 %v402
    %424 = vmatpush.bf16.msra.mxu0 %v401
    %425 = vmatmul.bf16.gmra.mxu0 %v365
    %v426 = vpop.f32.mrf.mxu0
    %v427 = vadd.f32 %v367, %v426
    %v428 = vpop.f32.mrf.mxu0
    %429 = vdwg.mxu0
    %v430 = vmax.f32 %v427, 0.0
    %v431 = vpack.c.bf16 %v430, %v430
    %v433 = vperm.slane %v90, 0
    %v451 = vunpack.c.l.b16 %v72
    %v452 = vunpack.c.l.b16 %v73
    %v453 = vunpack.c.l.b16 %v74
    %v454 = vunpack.c.l.b16 %v75
    %v455 = vunpack.c.l.b16 %v76
    %v456 = vunpack.c.l.b16 %v77
    %v457 = vunpack.c.l.b16 %v78
    %v458 = vunpack.c.l.b16 %v79
    %v459 = vunpack.c.l.b16 %v80
    %v460 = vunpack.c.l.b16 %v81
    %v461 = vunpack.c.l.b16 %v82
    %v462 = vunpack.c.l.b16 %v83
    %v463 = vunpack.c.l.b16 %v84
    %v464 = vunpack.c.l.b16 %v85
    %v465 = vunpack.c.l.b16 %v86
    %v466 = vunpack.c.l.b16 %v87
    %v467 = vpack.c.b16 %v452, %v451
    %v468 = vpack.c.b16 %v454, %v453
    %v469 = vpack.c.b16 %v456, %v455
    %v470 = vpack.c.b16 %v458, %v457
    %v471 = vpack.c.b16 %v460, %v459
    %v472 = vpack.c.b16 %v462, %v461
    %v473 = vpack.c.b16 %v464, %v463
    %v474 = vpack.c.b16 %v466, %v465
    %483 = vmatpush.bf16.msra.mxu0 %v474
    %484 = vmatpush.bf16.msra.mxu0 %v473
    %485 = vmatpush.bf16.msra.mxu0 %v472
    %486 = vmatpush.bf16.msra.mxu0 %v471
    %487 = vmatpush.bf16.msra.mxu0 %v470
    %488 = vmatpush.bf16.msra.mxu0 %v469
    %489 = vmatpush.bf16.msra.mxu0 %v468
    %490 = vmatpush.bf16.msra.mxu0 %v467
    %491 = vmatmul.bf16.gmra.mxu0 %v431
    %v492 = vpop.f32.mrf.mxu0
    %v493 = vadd.f32 %v433, %v492
    %v494 = vpop.f32.mrf.mxu0
    %495 = vdwg.mxu0
    %496 = vst [vmem:[%s5] sm:$0xff] %v493
    %v497 = vlaneseq
    %v498 = vand.u32 %v497, 127
    %vm499 = vcmp.lt.s32.totalorder %v498, 3
    %v500 = vsel %vm499, %v493, -1e+30
    %501 = vmax.xlane.f32.xlu0 %v500
    %v502 = vpop.xlane.xlu0 %501
    %v503 = vsub.f32 %v500, %v502
    %v504 = vmul.f32 %v503, 1.442695
    %v505 = vpow.pop %v504
    %506 = vadd.xlane.f32.xlu0 %v505
    %v507 = vpop.xlane.xlu0 %506
    %v508 = vlog2.pop %v507
    %v509 = vmul.f32 %v508, 0.6931472
    %v510 = vadd.f32 %v509, %v502
    %v511 = vsub.f32 %v500, %v510
    %v512 = vld [vmem:[%s4] sm:$0xff]
    %513 = vset.pattern.permute.xlu0 0
    %514 = vperm.xlu0 %513, %v512
    %v515 = vpop.permute.xlu0 %514
    %vm516 = vcmp.eq.s32.totalorder %v498, %v515
    %v517 = vsel %vm516, 1, 0
    %v518 = vcvt.s32.f32 %v517
    %vm519 = vcmp.ge.s32.totalorder %v512, 0
    %v520 = vsel %vm519, 1, 0
    %v521 = vcvt.s32.f32 %v520
    %v523 = vperm.slane %v91, 0
    %v525 = vmul.f32 %v518, %v523
    %526 = vadd.xlane.f32.xlu0 %v525
    %v527 = vpop.xlane.xlu0 %526
    %v528 = vmul.f32 %v518, %v511
    %529 = vadd.xlane.f32.xlu0 %v528
    %v530 = vpop.xlane.xlu0 %529
    %v531 = vsub.f32 0.0, %v530
    %v532 = vmul.f32 %v511, %v523
    %533 = vadd.xlane.f32.xlu0 %v532
    %v534 = vpop.xlane.xlu0 %533
    %v535 = vsub.f32 0.0, %v534
    %v536 = vmul.f32 %v535, %v521
    %vm537 = vcmask 7168
    %v538 = vsel %vm537, %v527, 0.0
    %539 = vadd.xlane.f32.xlu0 %v538
    %v540 = vpop.xlane.xlu0 %539
    %v541 = vrot.slane %v540, 4
    %v542 = vadd.f32 %v540, %v541
    %v543 = vrot.slane %v542, 2
    %v544 = vadd.f32 %v542, %v543
    %v545 = vrot.slane %v544, 1
    %v546 = vadd.f32 %v544, %v545
    %s547 = vtos %v546
    %v548 = vmul.f32 %v527, %v531
    %v549 = vsel %vm537, %v548, 0.0
    %550 = vadd.xlane.f32.xlu0 %v549
    %v551 = vpop.xlane.xlu0 %550
    %v552 = vrot.slane %v551, 4
    %v553 = vadd.f32 %v551, %v552
    %v554 = vrot.slane %v553, 2
    %v555 = vadd.f32 %v553, %v554
    %v556 = vrot.slane %v555, 1
    %v557 = vadd.f32 %v555, %v556
    %s558 = vtos %v557
    %s559 = smul.f32 %s558, 0.9
    %v560 = vsel %vm537, %v536, 0.0
    %561 = vadd.xlane.f32.xlu0 %v560
    %v562 = vpop.xlane.xlu0 %561
    %v563 = vrot.slane %v562, 4
    %v564 = vadd.f32 %v562, %v563
    %v565 = vrot.slane %v564, 2
    %v566 = vadd.f32 %v564, %v565
    %v567 = vrot.slane %v566, 1
    %v568 = vadd.f32 %v566, %v567
    %s569 = vtos %v568
    %s570 = smul.f32 %s569, 0.033333335
    %s571 = sadd.f32 %s559, %s570
    %v572 = vstv %s547
    %v573 = vrcp.pop %v572
    %v574 = vmul.f32 %v572, %v573
    %v575 = vsub.f32 1.0, %v574
    %v576 = vmul.f32 %v573, %v575
    %v577 = vadd.f32 %v573, %v576
    %vm578 = vweird.f32 %v572
    %vm579 = vweird.f32 %v573
    %vm580 = vmor %vm578, %vm579
    %v581 = vsel %vm580, %v573, %v577
    %v582 = vand.u32 2147483647, %v572
    %vm583 = vcmp.eq.f32.partialorder %v582, 8.507059e+37
    %v584 = vand.u32 %v572, 2147483648
    %v585 = vor.u32 1.1754944e-38, %v584
    %v586 = vsel %vm583, %v585, %v581
    %s587 = vtos %v586
    %s588 = smul.f32 %s571, %s587
    %s589 = scalar_lea.smem [#allocation5], 0
    %590 = sst [smem:[%s589]] %s588
    // Predicated region
    $region26: #{verification_head.1} parent=1 // pred_check
      _
    $region27: #{verification_head.1} parent=1 // pred_check_branch
      %592 = sbr.rel (0) target = $region29
    $region28: #{verification_head.1} parent=1 // pred_region
      _
    $region29: #{verification_head.1} parent=1 // pred_fallthru
      _
    // Predicated region
    $region30: #{verification_head.1} parent=1 // pred_check
      _
    $region31: #{verification_head.1} parent=1 // pred_check_branch
      %594 = sbr.rel (0) target = $region33
    $region32: #{verification_head.1} parent=1 // pred_region
      %596 = vsyncadd [#allocation4], 0
      %s598 = sshll.u32 %s6, 4
      %s599 = int_to_ptr.hbm [resolvable:$true] %s598
      %601 = dma.smem_to_hbm [#allocation5], 16, %s599, [#allocation4]
    $region33: #{verification_head.1} parent=1 // pred_fallthru
      _
    // Predicated region
    $region34: #{verification_head.1} parent=1 // pred_check
      _
    $region35: #{verification_head.1} parent=1 // pred_check_branch
      %603 = sbr.rel (0) target = $region37
    $region36: #{verification_head.1} parent=1 // pred_region
      _
    $region37: #{verification_head.1} parent=1 // pred_fallthru
      _
    // Predicated region
    $region38: #{verification_head.1} parent=1 // pred_check
      _
    $region39: #{verification_head.1} parent=1 // pred_check_branch
      %605 = sbr.rel (0) target = $region41
    $region40: #{verification_head.1} parent=1 // pred_region
      %607 = dma.done [#allocation4], 16
    $region41: #{verification_head.1} parent=1 // pred_fallthru
      _
    %608 = sfence
    %609 = vsyncpa [#allocation3], 1
    %610 = vsyncpa [#allocation4], 1

</llo_original>
